<compile_context>
chip_gen: v5e
topology: v5e:2x2
jax: 0.10.0
libtpu: 0.0.40
codegen_flags: <defaults>
</compile_context>

<pallas_src>
import math

import jax
import jax.numpy as jnp
from jax.experimental import pallas as pl
from jax.experimental.pallas import tpu as pltpu

_MIB = 1024 * 1024


def _tpu_vmem_capacity_bytes():
    """Per-core VMEM capacity; conservative default (v7x) if the query fails."""
    try:
        info = pltpu.get_tpu_info()
        cap = getattr(info, "vmem_capacity_bytes", None)
        if cap:
            return int(cap)
    except Exception:
        pass
    return 64 * _MIB


def _round_down(x, m):
    return (x // m) * m


def _offsets(c_sizes):
    offs, o = [], 0
    for c in c_sizes:
        offs.append(o)
        o += c
    return offs


def _lane_concat_kernel(c_sizes, inner):
    """Inputs viewed as (tile_out, c_i*inner); write at 128-aligned lane offsets."""
    offs = _offsets(c_sizes)

    def kernel(*refs):
        in_refs, out_ref = refs[:-1], refs[-1]
        for r, o, c in zip(in_refs, offs, c_sizes):
            out_ref[:, o * inner:(o + c) * inner] = r[...]

    return kernel


def _sublane_concat_kernel(c_sizes):
    """Inputs viewed as (tile_out, c_i, tile_in); write into sublane windows."""
    offs = _offsets(c_sizes)

    def kernel(*refs):
        in_refs, out_ref = refs[:-1], refs[-1]
        for r, o, c in zip(in_refs, offs, c_sizes):
            out_ref[:, o:o + c, :] = r[...]

    return kernel


def join_table(xs, dim, *, max_block_bytes=None):
    """Equivalent of torch.cat(xs, dim) implemented with a Pallas TPU kernel.

    max_block_bytes optionally overrides the single-copy (inputs+output) block
    budget; by default it is derived from the TPU generation's VMEM capacity.
    """
    xs = list(xs)
    assert len(xs) >= 1
    ndim = xs[0].ndim
    if dim < 0:
        dim += ndim
    dtype = xs[0].dtype
    for x in xs:
        assert x.dtype == dtype and x.ndim == ndim
        for a in range(ndim):
            if a != dim:
                assert x.shape[a] == xs[0].shape[a]

    out_shape = list(xs[0].shape)
    out_shape[dim] = sum(int(x.shape[dim]) for x in xs)
    out_shape = tuple(out_shape)

    outer = int(math.prod(xs[0].shape[:dim]))
    inner = int(math.prod(xs[0].shape[dim + 1:]))

    # Drop zero-width inputs along `dim`; degenerate shapes -> XLA concat.
    xs_nz = [x for x in xs if x.shape[dim] > 0]
    if not xs_nz or outer == 0 or inner == 0:
        return jnp.concatenate(xs, axis=dim)
    xs = xs_nz

    c_sizes = [int(x.shape[dim]) for x in xs]
    c_total = sum(c_sizes)
    itemsize = jnp.dtype(dtype).itemsize

    # Lane-sparse shapes (1-D concat, tiny trailing dims): XLA concat wins.
    if inner < 128:
        return jnp.concatenate(xs, axis=dim)

    # ---- generation-aware VMEM budgets --------------------------------------
    vmem_cap = _tpu_vmem_capacity_bytes()
    # Peak VMEM ~ 2x (double buffering) * (input blocks + output block).
    peak_cap = min(48 * _MIB, int(vmem_cap * 0.70))
    block_budget = peak_cap // 2 if max_block_bytes is None else int(max_block_bytes)
    vmem_limit = int(min(vmem_cap * 0.85, 100 * _MIB))

    sublane_mult = max(8, 32 // max(1, itemsize))   # 8 f32 / 16 bf16 / 32 int8
    total_in_bytes = sum(int(x.size) for x in xs) * itemsize
    cost = pl.CostEstimate(flops=0, transcendentals=0,
                           bytes_accessed=2 * total_in_bytes)

    def cparams(sem):
        return pltpu.CompilerParams(dimension_semantics=sem,
                                    vmem_limit_bytes=vmem_limit)

    row_bytes = 2 * c_total * inner * itemsize      # inputs + output, per outer row

    # ---- Path A: lane-collapsed (outer, c_i*inner), 128-aligned lane stores --
    if inner % 128 == 0:
        min_rows = min(outer, sublane_mult)
        if min_rows * row_bytes <= block_budget:
            tile_out = min(outer, max(1, block_budget // row_bytes))
            if tile_out < outer:
                tile_out = max(sublane_mult, _round_down(tile_out, sublane_mult))
            else:
                tile_out = outer
            # Keep enough grid steps for DMA overlap / v7x megacore sharing.
            if outer >= 4 * sublane_mult:
                min_steps = 4
            elif outer >= 2 * sublane_mult:
                min_steps = 2
            else:
                min_steps = 1
            while tile_out > sublane_mult and pl.cdiv(outer, tile_out) < min_steps:
                tile_out = max(sublane_mult,
                               _round_down(tile_out // 2, sublane_mult))

            grid = (pl.cdiv(outer, tile_out),)
            xs2d = [x.reshape(outer, c * inner) for x, c in zip(xs, c_sizes)]
            in_specs = [pl.BlockSpec((tile_out, c * inner), lambda i: (i, 0))
                        for c in c_sizes]
            out_spec = pl.BlockSpec((tile_out, c_total * inner), lambda i: (i, 0))

            out2d = pl.pallas_call(
                _lane_concat_kernel(c_sizes, inner),
                out_shape=jax.ShapeDtypeStruct((outer, c_total * inner), dtype),
                grid=grid,
                in_specs=in_specs,
                out_specs=out_spec,
                compiler_params=cparams(("parallel",)),
                cost_estimate=cost,
            )(*xs2d)
            return out2d.reshape(out_shape)

    # ---- Path B: 3-D (outer, c_i, inner), concat on the sublane axis ---------
    tile_in = inner
    if row_bytes > block_budget and inner % 128 == 0:
        cap_lanes = max(128, _round_down(block_budget // (2 * c_total * itemsize), 128))
        tile_in = min(inner, cap_lanes)

    blk_row_bytes = 2 * c_total * tile_in * itemsize
    if blk_row_bytes > block_budget:
        # Even a minimal (1, c_total, tile_in) block exceeds the budget.
        return jnp.concatenate(xs, axis=dim)

    tile_out = min(outer, max(1, block_budget // blk_row_bytes))
    grid = (pl.cdiv(outer, tile_out), pl.cdiv(inner, tile_in))

    xs3d = [x.reshape(outer, c, inner) for x, c in zip(xs, c_sizes)]
    idx = lambda i, j: (i, 0, j)
    in_specs = [pl.BlockSpec((tile_out, c, tile_in), idx) for c in c_sizes]
    out_spec = pl.BlockSpec((tile_out, c_total, tile_in), idx)

    out3d = pl.pallas_call(
        _sublane_concat_kernel(c_sizes),
        out_shape=jax.ShapeDtypeStruct((outer, c_total, inner), dtype),
        grid=grid,
        in_specs=in_specs,
        out_specs=out_spec,
        compiler_params=cparams(("parallel", "parallel")),
        cost_estimate=cost,
    )(*xs3d)
    return out3d.reshape(out_shape)


class JoinTable:
    """JAX/Pallas counterpart of the PyTorch JoinTable module."""

    def __init__(self, dim):
        self.dim = dim

    def __call__(self, x):
        return join_table(x, self.dim)


if __name__ == "__main__":
    key = jax.random.PRNGKey(0)
    k1, k2, k3 = jax.random.split(key, 3)

    # NCHW inputs concatenated along channels (dim=1): lane-collapsed path.
    a = jax.random.normal(k1, (2, 4, 16, 16), dtype=jnp.float32)
    b = jax.random.normal(k2, (2, 2, 16, 16), dtype=jnp.float32)
    c = jax.random.normal(k3, (2, 4, 16, 16), dtype=jnp.float32)

    mod = JoinTable(dim=1)
    y = jax.block_until_ready(mod([a, b, c]))
    ref = jnp.concatenate([a, b, c], axis=1)
    assert y.shape == (2, 10, 16, 16), y.shape
    assert y.dtype == ref.dtype
    assert bool(jnp.array_equal(y, ref))

    # Force the 3-D sublane path with a multi-step (2, 2) grid via a tiny
    # block budget.
    y2 = jax.block_until_ready(join_table([a, b, c], 1, max_block_bytes=16384))
    assert bool(jnp.array_equal(y2, ref))

    # dim=0 concat (outer == 1, lane-collapsed single block).
    d = jax.random.normal(k1, (3, 16, 16), dtype=jnp.float32)
    e = jax.random.normal(k2, (5, 16, 16), dtype=jnp.float32)
    y3 = jax.block_until_ready(join_table([d, e], 0))
    assert bool(jnp.array_equal(y3, jnp.concatenate([d, e], axis=0)))

    # inner not a multiple of 128 (16*12 = 192): 3-D sublane path.
    f = jax.random.normal(k1, (2, 3, 16, 12), dtype=jnp.float32)
    g = jax.random.normal(k2, (2, 5, 16, 12), dtype=jnp.float32)
    y4 = jax.block_until_ready(join_table([f, g], 1))
    assert bool(jnp.array_equal(y4, jnp.concatenate([f, g], axis=1)))

    # 1-D concat (inner < 128): jnp.concatenate fallback.
    p = jax.random.normal(k1, (7,), dtype=jnp.float32)
    q = jax.random.normal(k2, (9,), dtype=jnp.float32)
    y5 = jax.block_until_ready(join_table([p, q], 0))
    assert bool(jnp.array_equal(y5, jnp.concatenate([p, q], axis=0)))

    print("KERNEL_OK")
</pallas_src>

<mosaic_0001>
module attributes {stable_mosaic.version = 11 : i64} {
  func.func @kernel(%arg0: i32, %arg1: memref<2x1024xf32, #tpu.memory_space<vmem>>, %arg2: memref<2x512xf32, #tpu.memory_space<vmem>>, %arg3: memref<2x1024xf32, #tpu.memory_space<vmem>>, %arg4: memref<2x2560xf32, #tpu.memory_space<vmem>>) attributes {dimension_semantics = [#tpu.dimension_semantics<parallel>], iteration_bounds = array<i64: 1>, scalar_prefetch = 0 : i64, scratch_operands = 0 : i64, tpu.core_type = #tpu.core_type<tc>, window_params = [{transform_indices = @transform_0, window_bounds = array<i64: 2, 1024>}, {transform_indices = @transform_1, window_bounds = array<i64: 2, 512>}, {transform_indices = @transform_2, window_bounds = array<i64: 2, 1024>}, {transform_indices = @transform_3, window_bounds = array<i64: 2, 2560>}]} {
    %c0 = arith.constant 0 : index
    %c0_0 = arith.constant 0 : index
    %0 = vector.load %arg1[%c0, %c0_0] : memref<2x1024xf32, #tpu.memory_space<vmem>>, vector<2x1024xf32>
    %c0_1 = arith.constant 0 : index
    %c0_2 = arith.constant 0 : index
    %1 = vector.load %arg4[%c0_1, %c0_2] : memref<2x2560xf32, #tpu.memory_space<vmem>>, vector<2x1024xf32>
    tpu.vector_store %arg4[%c0_1, %c0_2], %0 {strides = array<i32>} : memref<2x2560xf32, #tpu.memory_space<vmem>>, vector<2x1024xf32>,
    %c0_3 = arith.constant 0 : index
    %c0_4 = arith.constant 0 : index
    %2 = vector.load %arg2[%c0_3, %c0_4] : memref<2x512xf32, #tpu.memory_space<vmem>>, vector<2x512xf32>
    %c0_5 = arith.constant 0 : index
    %c1024 = arith.constant 1024 : index
    %3 = vector.load %arg4[%c0_5, %c1024] : memref<2x2560xf32, #tpu.memory_space<vmem>>, vector<2x512xf32>
    tpu.vector_store %arg4[%c0_5, %c1024], %2 {strides = array<i32>} : memref<2x2560xf32, #tpu.memory_space<vmem>>, vector<2x512xf32>,
    %c0_6 = arith.constant 0 : index
    %c0_7 = arith.constant 0 : index
    %4 = vector.load %arg3[%c0_6, %c0_7] : memref<2x1024xf32, #tpu.memory_space<vmem>>, vector<2x1024xf32>
    %c0_8 = arith.constant 0 : index
    %c1536 = arith.constant 1536 : index
    %5 = vector.load %arg4[%c0_8, %c1536] : memref<2x2560xf32, #tpu.memory_space<vmem>>, vector<2x1024xf32>
    tpu.vector_store %arg4[%c0_8, %c1536], %4 {strides = array<i32>} : memref<2x2560xf32, #tpu.memory_space<vmem>>, vector<2x1024xf32>,
    return
  }
  func.func @transform_0(%arg0: i32) -> (i32, i32) {
    %c0_i32 = arith.constant 0 : i32
    %c0_i32_0 = arith.constant 0 : i32
    return %arg0, %c0_i32 : i32, i32
  }
  func.func @transform_1(%arg0: i32) -> (i32, i32) {
    %c0_i32 = arith.constant 0 : i32
    %c0_i32_0 = arith.constant 0 : i32
    return %arg0, %c0_i32 : i32, i32
  }
  func.func @transform_2(%arg0: i32) -> (i32, i32) {
    %c0_i32 = arith.constant 0 : i32
    %c0_i32_0 = arith.constant 0 : i32
    return %arg0, %c0_i32 : i32, i32
  }
  func.func @transform_3(%arg0: i32) -> (i32, i32) {
    %c0_i32 = arith.constant 0 : i32
    %c0_i32_0 = arith.constant 0 : i32
    return %arg0, %c0_i32 : i32, i32
  }
}

</mosaic_0001>

<llo_original>
// kernel: tpu_custom_call.1
$region0: #{tpu_custom_call.1}
  #allocation0 [shape = 'u32[]', space=smem, size = 0x4, offset = 0x4, fixed_abs, tag = 'smem constant byte address 0x4 - core index']
  #allocation1 [shape = 'u32[72,128]{1,0:T(1,128)}', space=vmem, size = 0x9000, scoped, tag = 'internal scratch']
  %s0 = inlined_call_operand.hbm [shape: f32[2,1024], index: 0, kind: input, shape index: {}]
  %s1 = inlined_call_operand.hbm [shape: f32[2,512], index: 1, kind: input, shape index: {}]
  %s2 = inlined_call_operand.hbm [shape: f32[2,1024], index: 2, kind: input, shape index: {}]
  %s3 = inlined_call_operand.hbm [shape: f32[2,2560], index: 3, kind: output, shape index: {}]
  %s4 = sld [smem:[#allocation0]]
  $region34: #{tpu_custom_call.1} parent=0
    _
  %s6 = ssub.s32 1, %s4
  %s7 = scalar_select 0, %s6, %s4
  $region1: #{tpu_custom_call.1} parent=0
    #allocation2 [shape = 'u8[8192]{0}', space=vmem, size = 0x2000, scoped, tag = 'input window, operand 0, single buffered']
    #allocation3 [shape = 's32[1]{0}', space=sflag, size = 0x4, scoped, tag = 'scoped memory for tpu_custom_call.1']
    #allocation4 [shape = 's32[1]{0}', space=sflag, size = 0x4, scoped, tag = 'scoped memory for tpu_custom_call.1']
    #allocation5 [shape = 'u8[4096]{0}', space=vmem, size = 0x1000, scoped, tag = 'input window, operand 1, single buffered']
    #allocation6 [shape = 's32[1]{0}', space=sflag, size = 0x4, scoped, tag = 'scoped memory for tpu_custom_call.1']
    #allocation7 [shape = 'u8[8192]{0}', space=vmem, size = 0x2000, scoped, tag = 'input window, operand 2, single buffered']
    #allocation8 [shape = 'u8[20480]{0}', space=vmem, size = 0x5000, scoped, tag = 'output window, operand 0, single buffered']
    %8 = vsyncpa [#allocation3], 0
    %9 = vsyncpa [#allocation6], 0
    %10 = vsyncpa [#allocation4], 0
    // Predicated region
    $region2: #{tpu_custom_call.1} parent=1 // pred_check
      _
    $region3: #{tpu_custom_call.1} parent=1 // pred_check_branch
      %12 = sbr.rel (0) target = $region5
    $region4: #{tpu_custom_call.1} parent=1 // pred_region
      %14 = vsyncadd [#allocation3], 0
      %s16 = sshll.u32 %s0, 4
      %s17 = int_to_ptr.hbm [resolvable:$true] %s16
      %s18 = sshll.u32 [#allocation2], 4
      %s19 = int_to_ptr.vmem [resolvable:$true] %s18
      %21 = dma.hbm_to_vmem [thread:$0]  %s17, 256, %s19, [#allocation3]
    $region5: #{tpu_custom_call.1} parent=1 // pred_fallthru
      _
    // Predicated region
    $region6: #{tpu_custom_call.1} parent=1 // pred_check
      _
    $region7: #{tpu_custom_call.1} parent=1 // pred_check_branch
      %23 = sbr.rel (0) target = $region9
    $region8: #{tpu_custom_call.1} parent=1 // pred_region
      %25 = vsyncadd [#allocation6], 0
      %s27 = sshll.u32 %s1, 4
      %s28 = int_to_ptr.hbm [resolvable:$true] %s27
      %s29 = sshll.u32 [#allocation5], 4
      %s30 = int_to_ptr.vmem [resolvable:$true] %s29
      %32 = dma.hbm_to_vmem [thread:$0]  %s28, 128, %s30, [#allocation6]
    $region9: #{tpu_custom_call.1} parent=1 // pred_fallthru
      _
    // Predicated region
    $region10: #{tpu_custom_call.1} parent=1 // pred_check
      _
    $region11: #{tpu_custom_call.1} parent=1 // pred_check_branch
      %34 = sbr.rel (0) target = $region13
    $region12: #{tpu_custom_call.1} parent=1 // pred_region
      %36 = vsyncadd [#allocation6], 0
      %s38 = sshll.u32 %s2, 4
      %s39 = int_to_ptr.hbm [resolvable:$true] %s38
      %s40 = sshll.u32 [#allocation7], 4
      %s41 = int_to_ptr.vmem [resolvable:$true] %s40
      %43 = dma.hbm_to_vmem [thread:$0]  %s39, 256, %s41, [#allocation6]
    $region13: #{tpu_custom_call.1} parent=1 // pred_fallthru
      _
    // Predicated region
    $region14: #{tpu_custom_call.1} parent=1 // pred_check
      _
    $region15: #{tpu_custom_call.1} parent=1 // pred_check_branch
      %45 = sbr.rel (0) target = $region17
    $region16: #{tpu_custom_call.1} parent=1 // pred_region
      %47 = dma.done [#allocation3], 256
    $region17: #{tpu_custom_call.1} parent=1 // pred_fallthru
      _
    // Predicated region
    $region18: #{tpu_custom_call.1} parent=1 // pred_check
      _
    $region19: #{tpu_custom_call.1} parent=1 // pred_check_branch
      %49 = sbr.rel (0) target = $region21
    $region20: #{tpu_custom_call.1} parent=1 // pred_region
      %51 = dma.done [#allocation6], 128
    $region21: #{tpu_custom_call.1} parent=1 // pred_fallthru
      _
    // Predicated region
    $region22: #{tpu_custom_call.1} parent=1 // pred_check
      _
    $region23: #{tpu_custom_call.1} parent=1 // pred_check_branch
      %53 = sbr.rel (0) target = $region25
    $region24: #{tpu_custom_call.1} parent=1 // pred_region
      %55 = dma.done [#allocation6], 256
    $region25: #{tpu_custom_call.1} parent=1 // pred_fallthru
      _
    %v56 = vld [vmem:[#allocation2] sm:$0xff]
    %v57 = vld [vmem:[#allocation2 + $0x8] sm:$0xff]
    %58 = vst [vmem:[#allocation8] sm:$0xff] %v56
    %59 = vst [vmem:[#allocation8 + $0x8] sm:$0xff] %v57
    %v60 = vld [vmem:[#allocation5] sm:$0xff]
    %61 = vst [vmem:[#allocation8 + $0x10] sm:$0xff] %v60
    %v62 = vld [vmem:[#allocation7] sm:$0xff]
    %v63 = vld [vmem:[#allocation7 + $0x8] sm:$0xff]
    %64 = vst [vmem:[#allocation8 + $0x18] sm:$0xff] %v62
    %65 = vst [vmem:[#allocation8 + $0x20] sm:$0xff] %v63
    // Predicated region
    $region26: #{tpu_custom_call.1} parent=1 // pred_check
      _
    $region27: #{tpu_custom_call.1} parent=1 // pred_check_branch
      %67 = sbr.rel (0) target = $region29
    $region28: #{tpu_custom_call.1} parent=1 // pred_region
      %69 = vsyncadd [#allocation4], 0
      %s71 = sshll.u32 [#allocation8], 4
      %s72 = int_to_ptr.vmem [resolvable:$true] %s71
      %s73 = sshll.u32 %s3, 4
      %s74 = int_to_ptr.hbm [resolvable:$true] %s73
      %76 = dma.vmem_to_hbm [thread:$0]  %s72, 640, %s74, [#allocation4]
    $region29: #{tpu_custom_call.1} parent=1 // pred_fallthru
      _
    // Predicated region
    $region30: #{tpu_custom_call.1} parent=1 // pred_check
      _
    $region31: #{tpu_custom_call.1} parent=1 // pred_check_branch
      %78 = sbr.rel (0) target = $region33
    $region32: #{tpu_custom_call.1} parent=1 // pred_region
      %80 = dma.done [#allocation4], 640
    $region33: #{tpu_custom_call.1} parent=1 // pred_fallthru
      _
    %81 = vsyncpa [#allocation3], 1
    %82 = vsyncpa [#allocation6], 1
    %83 = vsyncpa [#allocation4], 1

</llo_original>
